<compile_context>
chip_gen: v7x
topology: tpu7x:2x2x1
jax: 0.10.0
libtpu: 0.0.40
codegen_flags: <defaults>
</compile_context>

<pallas_src>
import functools

import jax
import jax.numpy as jnp
from jax.experimental import pallas as pl
from jax.experimental.pallas import tpu as pltpu


LN_EPS = 1e-5  # PyTorch nn.LayerNorm default


def _round_up(a, b):
    return (a + b - 1) // b * b


def _physical_vmem_bytes():
    """Best-effort physical VMEM query; conservative (v7x, 64 MiB) fallback."""
    try:
        info = pltpu.get_tpu_info()
        for name in ("vmem_capacity_bytes", "vmem_size_bytes", "vmem_bytes"):
            v = getattr(info, name, None)
            if v:
                return int(v)
    except Exception:
        pass
    return 64 * 2**20


def _patch_embed_kernel(p_ref, w_ref, b_ref, g_ref, beta_ref, o_ref, *, inv_e, pad_e):
    # p_ref   : (tm, K)   flattened patches tile (fed to the MXU as-is)
    # w_ref   : (K, Ep)   projection matrix, embed dim padded to a lane multiple
    # b_ref   : (1, Ep)   conv bias       (f32, zero in padded lanes)
    # g_ref   : (1, Ep)   layernorm gamma (f32, zero in padded lanes)
    # beta_ref: (1, Ep)   layernorm beta  (f32, zero in padded lanes)
    # o_ref   : (tm, Ep)  output tile (padded lanes written as 0)
    y = jnp.dot(p_ref[...], w_ref[...], preferred_element_type=jnp.float32)
    y = y + b_ref[...]

    # Two-pass LayerNorm statistics over the *real* embed dim E.  Padded lanes
    # of y are exactly zero (zero weight columns / zero bias), so the row sum
    # over Ep equals the sum over E.  After centering, each padded lane holds
    # -mean, so the centered sum of squares picks up exactly pad_e * mean^2,
    # which we subtract analytically.
    mean = jnp.sum(y, axis=-1, keepdims=True) * inv_e
    yc = y - mean
    ssq = jnp.sum(yc * yc, axis=-1, keepdims=True)
    if pad_e:
        ssq = ssq - float(pad_e) * mean * mean
    var = jnp.maximum(ssq * inv_e, 0.0)
    y_n = yc * jax.lax.rsqrt(var + LN_EPS)

    out = y_n * g_ref[...] + beta_ref[...]
    o_ref[...] = out.astype(o_ref.dtype)


def patch_embed_forward(x, conv_w, conv_b, ln_g, ln_b, patch_size, *,
                        max_tile_rows=2048, downcast_f32_to_bf16=False):
    """x: (B, C, H, W) NCHW.  Returns (tokens[B, N, E], (Hp, Wp))."""
    B, C, H, W = x.shape
    P = int(patch_size)
    assert H % P == 0 and W % P == 0
    Hp, Wp = H // P, W // P
    E = conv_w.shape[0]
    K = C * P * P
    M = B * Hp * Wp

    # --- Patchify: (B,C,Hp,P,Wp,P) -> (B,Hp,Wp,C,P,P) -> (M, K) -------------
    # TODO(synk): fold this NCHW patchify into the pallas_call itself
    # (in-kernel strided-DMA gather, or allow_input_fusion on operand 0 under
    # jit) to remove one full HBM read+write pass over the activations; kept
    # in XLA for now because the fused-transpose-operand / in-VMEM (C,P|Wp,P)
    # relayout path is not verified to lower cleanly on all of v5e/v6e/v7x.
    patches = x.reshape(B, C, Hp, P, Wp, P).transpose(0, 2, 4, 1, 3, 5)
    patches = patches.reshape(M, K)

    # --- Conv weight (E, C, P, P) -> (K, E) so the conv is patches @ w_mat ---
    w_mat = conv_w.reshape(E, K).T
    if downcast_f32_to_bf16 and x.dtype == jnp.float32:
        # Optional: halves the streamed-activation HBM read traffic.
        patches = patches.astype(jnp.bfloat16)
    if patches.dtype == jnp.bfloat16:
        w_mat = w_mat.astype(jnp.bfloat16)      # bf16 straight into the MXU
    else:
        w_mat = w_mat.astype(patches.dtype)

    # --- Lane-dense embed dim: pad E to a multiple of 128 (skip if aligned) --
    Ep = _round_up(E, 128)
    pad_e = Ep - E
    b2 = conv_b.astype(jnp.float32).reshape(1, E)
    g2 = ln_g.astype(jnp.float32).reshape(1, E)
    beta2 = ln_b.astype(jnp.float32).reshape(1, E)
    if pad_e:
        pad2 = ((0, 0), (0, pad_e))
        w_mat = jnp.pad(w_mat, pad2)
        b2 = jnp.pad(b2, pad2)
        g2 = jnp.pad(g2, pad2)
        beta2 = jnp.pad(beta2, pad2)

    # --- Generation-aware VMEM budget (v5e/v6e: 128 MiB, v7x: 64 MiB) -------
    if _physical_vmem_bytes() >= 96 * 2**20:
        vmem_budget, vmem_clamp = 88 * 2**20, 100 * 2**20   # v5e / v6e
    else:
        vmem_budget, vmem_clamp = 40 * 2**20, 48 * 2**20    # v7x

    # --- M tile: grow to the VMEM budget; keep the grid >= 2 blocks ---------
    xb = jnp.dtype(patches.dtype).itemsize
    wb = jnp.dtype(w_mat.dtype).itemsize
    ob = jnp.dtype(x.dtype).itemsize
    Kp = _round_up(K, 128)                       # (tm, K) block is lane-padded in VMEM
    const_bytes = 2 * K * Ep * wb + 6 * 8 * Ep * 4 + (2 << 20)  # weights(x2 bufs) + params + slack
    bytes_per_row = 2 * (Kp * xb + Ep * ob)                     # double-buffered in/out blocks

    if M <= 16:
        tm = M                                   # single full (possibly sub-8-row) block
    else:
        tm = max(vmem_budget - const_bytes, 16 * bytes_per_row) // bytes_per_row
        tm = int(max(16, (tm // 16) * 16))
        tm = min(tm, max(16, (max_tile_rows // 16) * 16))
        # >= 2 grid blocks so ("parallel",) can shard M across both v7x TCs.
        tm = min(tm, max(16, _round_up(pl.cdiv(M, 2), 16)))
        tm = min(tm, _round_up(M, 16))
    grid_m = pl.cdiv(M, tm)
    # Ragged M: no jnp.pad — Pallas masks the partial last block's stores, and
    # the garbage rows in the over-read region are never stored.

    est = 2 * tm * (Kp * xb + Ep * ob) + const_bytes
    vmem_limit = int(min(max(2 * est, 32 * 2**20), vmem_clamp))

    kernel = functools.partial(_patch_embed_kernel,
                               inv_e=1.0 / float(E), pad_e=int(pad_e))

    out = pl.pallas_call(
        kernel,
        out_shape=jax.ShapeDtypeStruct((M, Ep), x.dtype),
        grid_spec=pltpu.PrefetchScalarGridSpec(
            num_scalar_prefetch=0,
            grid=(grid_m,),
            in_specs=[
                pl.BlockSpec((tm, K), lambda i: (i, 0)),
                pl.BlockSpec((K, Ep), lambda i: (0, 0)),
                pl.BlockSpec((1, Ep), lambda i: (0, 0)),
                pl.BlockSpec((1, Ep), lambda i: (0, 0)),
                pl.BlockSpec((1, Ep), lambda i: (0, 0)),
            ],
            out_specs=pl.BlockSpec((tm, Ep), lambda i: (i, 0)),
        ),
        compiler_params=pltpu.CompilerParams(
            dimension_semantics=("parallel",),
            vmem_limit_bytes=vmem_limit,
        ),
    )(patches, w_mat, b2, g2, beta2)

    tokens = out if pad_e == 0 else out[:, :E]   # slice only when E is not lane-aligned
    tokens = tokens.reshape(B, Hp * Wp, E)
    return tokens, (Hp, Wp)


def reference_forward(x, conv_w, conv_b, ln_g, ln_b, patch_size):
    """Pure-JAX reference matching the PyTorch module semantics."""
    B, C, H, W = x.shape
    P = patch_size
    Hp, Wp = H // P, W // P
    E = conv_w.shape[0]
    patches = x.reshape(B, C, Hp, P, Wp, P).transpose(0, 2, 4, 1, 3, 5)
    patches = patches.reshape(B, Hp * Wp, C * P * P).astype(jnp.float32)
    w_mat = conv_w.reshape(E, C * P * P).T.astype(jnp.float32)
    y = patches @ w_mat + conv_b.astype(jnp.float32)
    mean = jnp.mean(y, axis=-1, keepdims=True)
    var = jnp.mean((y - mean) ** 2, axis=-1, keepdims=True)
    y = (y - mean) / jnp.sqrt(var + LN_EPS)
    y = y * ln_g.astype(jnp.float32) + ln_b.astype(jnp.float32)
    return y.astype(x.dtype), (Hp, Wp)


if __name__ == "__main__":
    # Small synthetic config consistent with PatchEmbed:
    # img_size=16, patch_size=4, in_chans=4, embed_dim=32, batch=2.
    B, C, H, W = 2, 4, 16, 16
    P = 4
    E = 32

    key = jax.random.PRNGKey(0)
    kx, kw, kb = jax.random.split(key, 3)
    x = jax.random.normal(kx, (B, C, H, W), dtype=jnp.float32)
    conv_w = jax.random.normal(kw, (E, C, P, P), dtype=jnp.float32) * 0.05
    conv_b = jax.random.normal(kb, (E,), dtype=jnp.float32) * 0.05
    ln_g = jnp.ones((E,), dtype=jnp.float32)   # nn.LayerNorm default init
    ln_b = jnp.zeros((E,), dtype=jnp.float32)

    out, (Hp, Wp) = patch_embed_forward(x, conv_w, conv_b, ln_g, ln_b, P)
    out = jax.block_until_ready(out)
    ref, (Hp_r, Wp_r) = reference_forward(x, conv_w, conv_b, ln_g, ln_b, P)
    assert out.shape == (B, (H // P) * (W // P), E)
    assert (Hp, Wp) == (Hp_r, Wp_r) == (H // P, W // P)
    assert jnp.allclose(out, ref, atol=1e-4, rtol=1e-4)

    # Ragged-M config (B=3 -> M=48, not a multiple of the chosen tile) to
    # exercise the masked partial-block path (no jnp.pad on M anymore).
    x3 = jax.random.normal(kx, (3, C, H, W), dtype=jnp.float32)
    out3, _ = patch_embed_forward(x3, conv_w, conv_b, ln_g, ln_b, P)
    out3 = jax.block_until_ready(out3)
    ref3, _ = reference_forward(x3, conv_w, conv_b, ln_g, ln_b, P)
    assert out3.shape == (3, (H // P) * (W // P), E)
    assert jnp.allclose(out3, ref3, atol=1e-4, rtol=1e-4)

    print("KERNEL_OK")
</pallas_src>

<mosaic_0001>
module attributes {stable_mosaic.version = 11 : i64} {
  func.func @_patch_embed_kernel(%arg0: i32, %arg1: memref<16x64xf32, #tpu.memory_space<vmem>>, %arg2: memref<64x128xf32, #tpu.memory_space<vmem>>, %arg3: memref<1x128xf32, #tpu.memory_space<vmem>>, %arg4: memref<1x128xf32, #tpu.memory_space<vmem>>, %arg5: memref<1x128xf32, #tpu.memory_space<vmem>>, %arg6: memref<16x128xf32, #tpu.memory_space<vmem>>) attributes {dimension_semantics = [#tpu.dimension_semantics<parallel>], iteration_bounds = array<i64: 2>, scalar_prefetch = 0 : i64, scratch_operands = 0 : i64, tpu.core_type = #tpu.core_type<tc>, window_params = [{transform_indices = @transform_0, window_bounds = array<i64: 16, 64>}, {pipeline_mode = #tpu.pipeline_mode<synchronous>, transform_indices = @transform_1, window_bounds = array<i64: 64, 128>}, {pipeline_mode = #tpu.pipeline_mode<synchronous>, transform_indices = @transform_2, window_bounds = array<i64: 1, 128>}, {pipeline_mode = #tpu.pipeline_mode<synchronous>, transform_indices = @transform_3, window_bounds = array<i64: 1, 128>}, {pipeline_mode = #tpu.pipeline_mode<synchronous>, transform_indices = @transform_4, window_bounds = array<i64: 1, 128>}, {transform_indices = @transform_5, window_bounds = array<i64: 16, 128>}]} {
    %c0 = arith.constant 0 : index
    %c0_0 = arith.constant 0 : index
    %0 = vector.load %arg1[%c0, %c0_0] : memref<16x64xf32, #tpu.memory_space<vmem>>, vector<16x64xf32>
    %c0_1 = arith.constant 0 : index
    %c0_2 = arith.constant 0 : index
    %1 = vector.load %arg2[%c0_1, %c0_2] : memref<64x128xf32, #tpu.memory_space<vmem>>, vector<64x128xf32>
    %cst = arith.constant dense<0.000000e+00> : vector<16x128xf32>
    %2 = tpu.matmul %0, %1, %cst {dimension_numbers = #tpu.dot_dimension_numbers<[1], [0], [0], [1], [0, 0, 1, 1], [], []>} : vector<16x64xf32>, vector<64x128xf32>, vector<16x128xf32> -> vector<16x128xf32>
    %c0_3 = arith.constant 0 : index
    %c0_4 = arith.constant 0 : index
    %3 = vector.load %arg3[%c0_3, %c0_4] : memref<1x128xf32, #tpu.memory_space<vmem>>, vector<1x128xf32>
    %4 = vector.broadcast %3 : vector<1x128xf32> to vector<16x128xf32>
    %5 = arith.addf %2, %4 : vector<16x128xf32>
    %cst_5 = arith.constant dense<0.000000e+00> : vector<16xf32>
    %6 = vector.multi_reduction <add>, %5, %cst_5 [1] : vector<16x128xf32> to vector<16xf32>
    %7 = vector.shape_cast %6 : vector<16xf32> to vector<16x1xf32>
    %cst_6 = arith.constant 3.125000e-02 : f32
    %8 = vector.broadcast %cst_6 : f32 to vector<16x1xf32>
    %9 = arith.mulf %7, %8 : vector<16x1xf32>
    %10 = vector.broadcast %9 : vector<16x1xf32> to vector<16x128xf32>
    %11 = arith.subf %5, %10 : vector<16x128xf32>
    %12 = arith.mulf %11, %11 : vector<16x128xf32>
    %cst_7 = arith.constant dense<0.000000e+00> : vector<16xf32>
    %13 = vector.multi_reduction <add>, %12, %cst_7 [1] : vector<16x128xf32> to vector<16xf32>
    %14 = vector.shape_cast %13 : vector<16xf32> to vector<16x1xf32>
    %cst_8 = arith.constant 9.600000e+01 : f32
    %15 = vector.broadcast %cst_8 : f32 to vector<16x1xf32>
    %16 = arith.mulf %15, %9 : vector<16x1xf32>
    %17 = arith.mulf %16, %9 : vector<16x1xf32>
    %18 = arith.subf %14, %17 : vector<16x1xf32>
    %cst_9 = arith.constant 3.125000e-02 : f32
    %19 = vector.broadcast %cst_9 : f32 to vector<16x1xf32>
    %20 = arith.mulf %18, %19 : vector<16x1xf32>
    %cst_10 = arith.constant 0.000000e+00 : f32
    %21 = vector.broadcast %cst_10 : f32 to vector<16x1xf32>
    %22 = arith.maximumf %20, %21 : vector<16x1xf32>
    %cst_11 = arith.constant 9.99999974E-6 : f32
    %23 = vector.broadcast %cst_11 : f32 to vector<16x1xf32>
    %24 = arith.addf %22, %23 : vector<16x1xf32>
    %25 = math.rsqrt %24 : vector<16x1xf32>
    %26 = vector.broadcast %25 : vector<16x1xf32> to vector<16x128xf32>
    %27 = arith.mulf %11, %26 : vector<16x128xf32>
    %c0_12 = arith.constant 0 : index
    %c0_13 = arith.constant 0 : index
    %28 = vector.load %arg4[%c0_12, %c0_13] : memref<1x128xf32, #tpu.memory_space<vmem>>, vector<1x128xf32>
    %29 = vector.broadcast %28 : vector<1x128xf32> to vector<16x128xf32>
    %30 = arith.mulf %27, %29 : vector<16x128xf32>
    %c0_14 = arith.constant 0 : index
    %c0_15 = arith.constant 0 : index
    %31 = vector.load %arg5[%c0_14, %c0_15] : memref<1x128xf32, #tpu.memory_space<vmem>>, vector<1x128xf32>
    %32 = vector.broadcast %31 : vector<1x128xf32> to vector<16x128xf32>
    %33 = arith.addf %30, %32 : vector<16x128xf32>
    %c0_16 = arith.constant 0 : index
    %c0_17 = arith.constant 0 : index
    %34 = vector.load %arg6[%c0_16, %c0_17] : memref<16x128xf32, #tpu.memory_space<vmem>>, vector<16x128xf32>
    tpu.vector_store %arg6[%c0_16, %c0_17], %33 {strides = array<i32>} : memref<16x128xf32, #tpu.memory_space<vmem>>, vector<16x128xf32>,
    return
  }
  func.func @transform_0(%arg0: i32) -> (i32, i32) {
    %c0_i32 = arith.constant 0 : i32
    %c0_i32_0 = arith.constant 0 : i32
    return %arg0, %c0_i32 : i32, i32
  }
  func.func @transform_1(%arg0: i32) -> (i32, i32) {
    %c0_i32 = arith.constant 0 : i32
    %c0_i32_0 = arith.constant 0 : i32
    %c0_i32_1 = arith.constant 0 : i32
    return %c0_i32, %c0_i32_0 : i32, i32
  }
  func.func @transform_2(%arg0: i32) -> (i32, i32) {
    %c0_i32 = arith.constant 0 : i32
    %c0_i32_0 = arith.constant 0 : i32
    %c0_i32_1 = arith.constant 0 : i32
    return %c0_i32, %c0_i32_0 : i32, i32
  }
  func.func @transform_3(%arg0: i32) -> (i32, i32) {
    %c0_i32 = arith.constant 0 : i32
    %c0_i32_0 = arith.constant 0 : i32
    %c0_i32_1 = arith.constant 0 : i32
    return %c0_i32, %c0_i32_0 : i32, i32
  }
  func.func @transform_4(%arg0: i32) -> (i32, i32) {
    %c0_i32 = arith.constant 0 : i32
    %c0_i32_0 = arith.constant 0 : i32
    %c0_i32_1 = arith.constant 0 : i32
    return %c0_i32, %c0_i32_0 : i32, i32
  }
  func.func @transform_5(%arg0: i32) -> (i32, i32) {
    %c0_i32 = arith.constant 0 : i32
    %c0_i32_0 = arith.constant 0 : i32
    return %arg0, %c0_i32 : i32, i32
  }
}

</mosaic_0001>

<llo_original>
// kernel: tpu_custom_call.1
$region0: #{tpu_custom_call.1}
  #allocation0 [shape = 'u32[]', space=smem, size = 0x4, offset = 0x4, fixed_abs, tag = 'smem constant byte address 0x4 - core index']
  #allocation1 [shape = 'u32[144,128]{1,0:T(1,128)}', space=vmem, size = 0x12000, scoped, tag = 'internal scratch']
  %s0 = inlined_call_operand.hbm [shape: f32[32,64], index: 0, kind: input, shape index: {}]
  %s1 = inlined_call_operand.hbm [shape: f32[64,128], index: 1, kind: input, shape index: {}]
  %s2 = inlined_call_operand.vmem [shape: f32[1,128], index: 2, kind: input, shape index: {}]
  %s3 = inlined_call_operand.vmem [shape: f32[1,128], index: 3, kind: input, shape index: {}]
  %s4 = inlined_call_operand.vmem [shape: f32[1,128], index: 4, kind: input, shape index: {}]
  %s5 = inlined_call_operand.hbm [shape: f32[32,128], index: 5, kind: output, shape index: {}]
  %s6 = sld [smem:[#allocation0]]
  $region61: #{tpu_custom_call.1} parent=0
    _
  %s8 = ssub.s32 1, %s6
  %s9 = scalar_select 0, %s8, %s6
  $region1: #{tpu_custom_call.1} parent=0
    #allocation2 [shape = 'u8[16384]{0}', space=vmem, size = 0x4000, scoped, tag = 'input window, operand 0']
    #allocation3 [shape = 's32[2]{0}', space=sflag, size = 0x8, scoped, tag = 'scoped memory for tpu_custom_call.1']
    #allocation4 [shape = 's32[2]{0}', space=sflag, size = 0x8, scoped, tag = 'scoped memory for tpu_custom_call.1']
    #allocation5 [shape = 'u8[32768]{0}', space=vmem, size = 0x8000, scoped, tag = 'input window, operand 1, single buffered']
    #allocation6 [shape = 's32[1]{0}', space=sflag, size = 0x4, scoped, tag = 'scoped memory for tpu_custom_call.1']
    #allocation7 [shape = 'u8[16384]{0}', space=vmem, size = 0x4000, scoped, tag = 'output window, operand 0']
    %10 = vsyncpa [#allocation3], 0
    %s11 = scalar_lea.sflag [#allocation3], 1
    %12 = vsyncpa %s11, 0
    %13 = vsyncpa [#allocation6], 0
    %14 = vsyncpa [#allocation4], 0
    %s15 = scalar_lea.sflag [#allocation4], 1
    %16 = vsyncpa %s15, 0
    loop: start=0, step=1, limit=4
    $region2: #{tpu_custom_call.1} parent=1 // loop_pre_header
      _
    $region3: #{tpu_custom_call.1} parent=1 // loop_header
      %s18 = sphi 0, %s22
      %p19 = scmp.ge.s32.totalorder %s18, 4
      %s28 = sphi 0, %s30
      %s31 = sphi 0, %s28
      %s32 = sphi 0, %s31
      %s48 = sphi 0, %s32
      %s52 = sphi 0, %s52
      %s54 = sphi 0, %s52
      %s55 = sphi 0, %s54
      %s69 = sphi 0, %s55
      %s73 = sphi 0, %s73
      %s75 = sphi 0, %s73
      %s76 = sphi 0, %s75
      %s90 = sphi 0, %s76
      %s94 = sphi 0, %s94
      %s96 = sphi 0, %s94
      %s97 = sphi 0, %s96
      %s111 = sphi 0, %s97
      %s115 = sphi 0, %s115
      %s117 = sphi 0, %s115
      %s118 = sphi 0, %s117
      %s132 = sphi 0, %s118
      %s138 = sphi 0, %s140
      %s141 = sphi 0, %s138
      %s142 = sphi 0, %s141
      %s158 = sphi 0, %s142
    $region4: #{tpu_custom_call.1} parent=1 // loop_header_branch
      %21 = sbr.rel (%p19) target = $region8
    $region5: #{tpu_custom_call.1} parent=1 // loop_body
      %s23 = ssub.s32 %s18, 1
      %s24 = ssub.s32 %s18, 2
      %s25 = sadd.s32 %s18, 1
      %s26 = ssub.s32 %s18, %s25
      %p27 = scmp.eq.s32.totalorder %s26, 0
      %s29 = sadd.s32 %s28, 1
      %s30 = scalar_select %p27, %s28, %s29
      %p33 = pneg %p27
      %p34 = scmp.eq.s32.totalorder %s18, 1
      %p35 = por %p33, %p34
      %p36 = scmp.ne.s32.totalorder %s28, %s31
      %p37 = scmp.eq.s32.totalorder %s18, 0
      %p38 = por %p36, %p37
      %p39 = scmp.ne.s32.totalorder %s28, %s31
      %p40 = scmp.eq.s32.totalorder %s23, 1
      %p41 = por %p39, %p40
      %p42 = scmp.ne.s32.totalorder %s31, %s32
      %p43 = scmp.eq.s32.totalorder %s23, 0
      %p44 = por %p42, %p43
      %p45 = scmp.ne.s32.totalorder %s31, %s32
      %p46 = scmp.eq.s32.totalorder %s24, 1
      %p47 = por %p45, %p46
      %p49 = scmp.ne.s32.totalorder %s32, %s48
      %p50 = scmp.eq.s32.totalorder %s24, 0
      %p51 = por %p49, %p50
      %s53 = sadd.s32 %s52, 1
      %p56 = scmp.eq.s32.totalorder %s18, 1
      %p57 = scmp.ne.s32.totalorder %s52, %s54
      %p58 = scmp.eq.s32.totalorder %s18, 0
      %p59 = por %p57, %p58
      %p60 = scmp.ne.s32.totalorder %s52, %s54
      %p61 = scmp.eq.s32.totalorder %s23, 1
      %p62 = por %p60, %p61
      %p63 = scmp.ne.s32.totalorder %s54, %s55
      %p64 = scmp.eq.s32.totalorder %s23, 0
      %p65 = por %p63, %p64
      %p66 = scmp.ne.s32.totalorder %s54, %s55
      %p67 = scmp.eq.s32.totalorder %s24, 1
      %p68 = por %p66, %p67
      %p70 = scmp.ne.s32.totalorder %s55, %s69
      %p71 = scmp.eq.s32.totalorder %s24, 0
      %p72 = por %p70, %p71
      %s74 = sadd.s32 %s73, 1
      %p77 = scmp.eq.s32.totalorder %s18, 1
      %p78 = scmp.ne.s32.totalorder %s73, %s75
      %p79 = scmp.eq.s32.totalorder %s18, 0
      %p80 = por %p78, %p79
      %p81 = scmp.ne.s32.totalorder %s73, %s75
      %p82 = scmp.eq.s32.totalorder %s23, 1
      %p83 = por %p81, %p82
      %p84 = scmp.ne.s32.totalorder %s75, %s76
      %p85 = scmp.eq.s32.totalorder %s23, 0
      %p86 = por %p84, %p85
      %p87 = scmp.ne.s32.totalorder %s75, %s76
      %p88 = scmp.eq.s32.totalorder %s24, 1
      %p89 = por %p87, %p88
      %p91 = scmp.ne.s32.totalorder %s76, %s90
      %p92 = scmp.eq.s32.totalorder %s24, 0
      %p93 = por %p91, %p92
      %s95 = sadd.s32 %s94, 1
      %p98 = scmp.eq.s32.totalorder %s18, 1
      %p99 = scmp.ne.s32.totalorder %s94, %s96
      %p100 = scmp.eq.s32.totalorder %s18, 0
      %p101 = por %p99, %p100
      %p102 = scmp.ne.s32.totalorder %s94, %s96
      %p103 = scmp.eq.s32.totalorder %s23, 1
      %p104 = por %p102, %p103
      %p105 = scmp.ne.s32.totalorder %s96, %s97
      %p106 = scmp.eq.s32.totalorder %s23, 0
      %p107 = por %p105, %p106
      %p108 = scmp.ne.s32.totalorder %s96, %s97
      %p109 = scmp.eq.s32.totalorder %s24, 1
      %p110 = por %p108, %p109
      %p112 = scmp.ne.s32.totalorder %s97, %s111
      %p113 = scmp.eq.s32.totalorder %s24, 0
      %p114 = por %p112, %p113
      %s116 = sadd.s32 %s115, 1
      %p119 = scmp.eq.s32.totalorder %s18, 1
      %p120 = scmp.ne.s32.totalorder %s115, %s117
      %p121 = scmp.eq.s32.totalorder %s18, 0
      %p122 = por %p120, %p121
      %p123 = scmp.ne.s32.totalorder %s115, %s117
      %p124 = scmp.eq.s32.totalorder %s23, 1
      %p125 = por %p123, %p124
      %p126 = scmp.ne.s32.totalorder %s117, %s118
      %p127 = scmp.eq.s32.totalorder %s23, 0
      %p128 = por %p126, %p127
      %p129 = scmp.ne.s32.totalorder %s117, %s118
      %p130 = scmp.eq.s32.totalorder %s24, 1
      %p131 = por %p129, %p130
      %p133 = scmp.ne.s32.totalorder %s118, %s132
      %p134 = scmp.eq.s32.totalorder %s24, 0
      %p135 = por %p133, %p134
      %s136 = ssub.s32 %s18, %s25
      %p137 = scmp.eq.s32.totalorder %s136, 0
      %s139 = sadd.s32 %s138, 1
      %s140 = scalar_select %p137, %s138, %s139
      %p143 = pneg %p137
      %p144 = scmp.eq.s32.totalorder %s18, 1
      %p145 = por %p143, %p144
      %p146 = scmp.ne.s32.totalorder %s138, %s141
      %p147 = scmp.eq.s32.totalorder %s18, 0
      %p148 = por %p146, %p147
      %p149 = scmp.ne.s32.totalorder %s138, %s141
      %p150 = scmp.eq.s32.totalorder %s23, 1
      %p151 = por %p149, %p150
      %p152 = scmp.ne.s32.totalorder %s141, %s142
      %p153 = scmp.eq.s32.totalorder %s23, 0
      %p154 = por %p152, %p153
      %p155 = scmp.ne.s32.totalorder %s141, %s142
      %p156 = scmp.eq.s32.totalorder %s24, 1
      %p157 = por %p155, %p156
      %p159 = scmp.ne.s32.totalorder %s142, %s158
      %p160 = scmp.eq.s32.totalorder %s24, 0
      %p161 = por %p159, %p160
      %p162 = scmp.le.s32.totalorder 1, %s18
      %p163 = scmp.lt.s32.totalorder %s18, 3
      %p164 = pnand %p162, %p163
      %p165 = pneg %p164
      // Predicated region
      $region9: #{tpu_custom_call.1} parent=5 // pred_check
        _
      $region10: #{tpu_custom_call.1} parent=5 // pred_check_branch
        %167 = sbr.rel (%p164) target = $region12
      $region11: #{tpu_custom_call.1} parent=5 // pred_region
        %s168 = ssub.s32 %s18, 1
        // Predicated region
        $region13: #{tpu_custom_call.1} parent=11 // pred_check
          %p169 = pneg %p65
        $region14: #{tpu_custom_call.1} parent=11 // pred_check_branch
          %171 = sbr.rel (%p169) target = $region16
        $region15: #{tpu_custom_call.1} parent=11 // pred_region
          %s173 = ssub.s32 1024, 1024
          %174 = vsyncadd [#allocation6], %s173
          %s175 = sshll.u32 [#allocation5], 4
          %s176 = int_to_ptr.vmem [resolvable:$true] %s175
          %181 = dma.hbm_to_vmem [thread:$0]  %s1, 1024, %s176, [#allocation6], 128, 128, 8
        $region16: #{tpu_custom_call.1} parent=11 // pred_fallthru
          _
        // Predicated region
        $region17: #{tpu_custom_call.1} parent=11 // pred_check
          %p182 = pneg %p86
        $region18: #{tpu_custom_call.1} parent=11 // pred_check_branch
          %184 = sbr.rel (%p182) target = $region20
        $region19: #{tpu_custom_call.1} parent=11 // pred_region
          _
        $region20: #{tpu_custom_call.1} parent=11 // pred_fallthru
          _
        // Predicated region
        $region21: #{tpu_custom_call.1} parent=11 // pred_check
          %p185 = pneg %p107
        $region22: #{tpu_custom_call.1} parent=11 // pred_check_branch
          %187 = sbr.rel (%p185) target = $region24
        $region23: #{tpu_custom_call.1} parent=11 // pred_region
          _
        $region24: #{tpu_custom_call.1} parent=11 // pred_fallthru
          _
        // Predicated region
        $region25: #{tpu_custom_call.1} parent=11 // pred_check
          %p188 = pneg %p128
        $region26: #{tpu_custom_call.1} parent=11 // pred_check_branch
          %190 = sbr.rel (%p188) target = $region28
        $region27: #{tpu_custom_call.1} parent=11 // pred_region
          _
        $region28: #{tpu_custom_call.1} parent=11 // pred_fallthru
          _
      $region12: #{tpu_custom_call.1} parent=5 // pred_fallthru
        _
      %p191 = scmp.lt.s32.totalorder %s18, 2
      // Predicated region
      $region29: #{tpu_custom_call.1} parent=5 // pred_check
        %p192 = pneg %p191
      $region30: #{tpu_custom_call.1} parent=5 // pred_check_branch
        %194 = sbr.rel (%p192) target = $region32
      $region31: #{tpu_custom_call.1} parent=5 // pred_region
        // Predicated region
        $region33: #{tpu_custom_call.1} parent=31 // pred_check
          %p195 = pneg %p38
        $region34: #{tpu_custom_call.1} parent=31 // pred_check_branch
          %197 = sbr.rel (%p195) target = $region36
        $region35: #{tpu_custom_call.1} parent=31 // pred_region
          %s198 = sand.u32 %s28, 1
          %s199 = scalar_lea.sflag [#allocation3], %s198
          %s200 = sand.u32 %s28, 1
          %s201 = smul.addr %s200, 16
          %s202 = scalar_lea.vmem [#allocation2], %s201
          %s203 = smul.u32 2, %s18
          %s205 = ssub.s32 256, 256
          %206 = vsyncadd %s199, %s205
          %s207 = smul.addr %s203, 128
          %s208 = scalar_lea.hbm %s0, %s207
          %s209 = sshll.u32 %s202, 4
          %s210 = int_to_ptr.vmem [resolvable:$true] %s209
          %215 = dma.hbm_to_vmem [thread:$0]  %s208, 256, %s210, %s199, 128, 128, 8
        $region36: #{tpu_custom_call.1} parent=31 // pred_fallthru
          _
      $region32: #{tpu_custom_call.1} parent=5 // pred_fallthru
        _
      %p216 = scmp.le.s32.totalorder 1, %s18
      %p217 = scmp.lt.s32.totalorder %s18, 3
      %p218 = pnand %p216, %p217
      %p219 = pneg %p218
      // Predicated region
      $region37: #{tpu_custom_call.1} parent=5 // pred_check
        _
      $region38: #{tpu_custom_call.1} parent=5 // pred_check_branch
        %221 = sbr.rel (%p218) target = $region40
      $region39: #{tpu_custom_call.1} parent=5 // pred_region
        %s222 = ssub.s32 %s18, 1
        %s223 = sand.u32 %s31, 1
        %s224 = scalar_lea.sflag [#allocation3], %s223
        %s225 = sand.u32 %s31, 1
        %s226 = smul.addr %s225, 16
        %s227 = scalar_lea.vmem [#allocation2], %s226
        // Predicated region
        $region41: #{tpu_custom_call.1} parent=39 // pred_check
          %p228 = pneg %p44
        $region42: #{tpu_custom_call.1} parent=39 // pred_check_branch
          %230 = sbr.rel (%p228) target = $region44
        $region43: #{tpu_custom_call.1} parent=39 // pred_region
          %231 = dma.done %s224, 256
        $region44: #{tpu_custom_call.1} parent=39 // pred_fallthru
          _
        // Predicated region
        $region45: #{tpu_custom_call.1} parent=39 // pred_check
          %p232 = pneg %p65
        $region46: #{tpu_custom_call.1} parent=39 // pred_check_branch
          %234 = sbr.rel (%p232) target = $region48
        $region47: #{tpu_custom_call.1} parent=39 // pred_region
          %235 = dma.done [#allocation6], 1024
        $region48: #{tpu_custom_call.1} parent=39 // pred_fallthru
          _
        %s236 = sand.u32 %s31, 1
        %s237 = scalar_lea.sflag [#allocation3], %s236
        %s238 = sand.u32 %s31, 1
        %s239 = smul.addr %s238, 16
        %s240 = scalar_lea.vmem [#allocation2], %s239
        %p241 = pneg %p44
        %p242 = pneg %p41
        %p243 = pneg %p65
        %p244 = pneg %p62
        %p245 = pneg %p86
        %p246 = pneg %p83
        %p247 = pneg %p107
        %p248 = pneg %p104
        %p249 = pneg %p128
        %p250 = pneg %p125
        %p251 = pneg %p154
        %p252 = pneg %p151
        %s253 = sand.u32 %s141, 1
        %s254 = scalar_lea.sflag [#allocation4], %s253
        %s255 = sand.u32 %s141, 1
        %s256 = smul.addr %s255, 16
        %s257 = scalar_lea.vmem [#allocation7], %s256
        %s258 = smul.u32 2, %s23
        %s259 = smul.u32 2, %s23
        %v260 = vld [vmem:[%s227] sm:$0xff]
        %v261 = vld [vmem:[%s227 + $0x8] sm:$0xff]
        %v262 = vld [vmem:[#allocation5] sm:$0xff]
        %v263 = vld [vmem:[#allocation5 + $0x8] sm:$0xff]
        %v264 = vld [vmem:[#allocation5 + $0x10] sm:$0xff]
        %v265 = vld [vmem:[#allocation5 + $0x18] sm:$0xff]
        %v266 = vld [vmem:[#allocation5 + $0x20] sm:$0xff]
        %v267 = vld [vmem:[#allocation5 + $0x28] sm:$0xff]
        %v268 = vld [vmem:[#allocation5 + $0x30] sm:$0xff]
        %v269 = vld [vmem:[#allocation5 + $0x38] sm:$0xff]
        %v270 = vld [vmem:[%s2] sm:$0x1]
        %v272 = vlaneseq
        %v273 = vshrl.u32 %v272, 7
        %v274 = vsub.s32 0, %v273
        %v275 = vrot.slane %v270, %v274
        %vm277 = vcmask 523264
        %v279 = vsel %vm277, %v260, 0
        %v282 = vsel %vm277, %v261, 0
        %284 = vmatprep.subr.mxu0 0.0
        %285 = vmatpush1.msra.mxu0 %v262
        %286 = vmatprep.subr.mxu0 0.0
        %287 = vmatpush1.msra.mxu0 %v263
        %288 = vmatprep.subr.mxu0 0.0
        %289 = vmatpush1.msra.mxu0 %v264
        %290 = vmatprep.subr.mxu0 0.0
        %291 = vmatpush1.msra.mxu0 %v265
        %292 = vmatprep.subr.mxu0 0.0
        %293 = vmatpush1.msra.mxu0 %v266
        %294 = vmatprep.subr.mxu0 0.0
        %295 = vmatpush1.msra.mxu0 %v267
        %296 = vmatprep.subr.mxu0 0.0
        %297 = vmatpush1.msra.mxu0 %v268
        %298 = vmatprep.subr.mxu0 0.0
        %299 = vmatpush1.msra.mxu0 %v269
        %300 = vmatprep.subr.mxu0 0.0
        %301 = vmatpush1.msra.mxu0 0.0
        %302 = vmatprep.subr.mxu0 0.0
        %303 = vmatpush1.msra.mxu0 0.0
        %304 = vmatprep.subr.mxu0 0.0
        %305 = vmatpush1.msra.mxu0 0.0
        %306 = vmatprep.subr.mxu0 0.0
        %307 = vmatpush1.msra.mxu0 0.0
        %308 = vmatprep.subr.mxu0 0.0
        %309 = vmatpush1.msra.mxu0 0.0
        %310 = vmatprep.subr.mxu0 0.0
        %311 = vmatpush1.msra.mxu0 0.0
        %312 = vmatprep.subr.mxu0 0.0
        %313 = vmatpush1.msra.mxu0 0.0
        %314 = vmatprep.subr.mxu0 0.0
        %315 = vmatpush1.msra.mxu0 0.0
        %316 = vmatprep.subr.mxu0 0.0
        %317 = vmatpush1.msra.mxu0 0.0
        %318 = vmatprep.subr.mxu0 0.0
        %319 = vmatpush1.msra.mxu0 0.0
        %320 = vmatprep.subr.mxu0 0.0
        %321 = vmatpush1.msra.mxu0 0.0
        %322 = vmatprep.subr.mxu0 0.0
        %323 = vmatpush1.msra.mxu0 0.0
        %324 = vmatprep.subr.mxu0 0.0
        %325 = vmatpush1.msra.mxu0 0.0
        %326 = vmatprep.subr.mxu0 0.0
        %327 = vmatpush1.msra.mxu0 0.0
        %328 = vmatprep.subr.mxu0 0.0
        %329 = vmatpush1.msra.mxu0 0.0
        %330 = vmatprep.subr.mxu0 0.0
        %331 = vmatpush1.msra.mxu0 0.0
        %332 = vmatprep.subr.mxu0 0.0
        %333 = vmatpush1.msra.mxu0 0.0
        %334 = vmatprep.subr.mxu0 0.0
        %335 = vmatpush1.msra.mxu0 0.0
        %336 = vmatprep.subr.mxu0 0.0
        %337 = vmatpush1.msra.mxu0 0.0
        %338 = vmatprep.subr.mxu0 0.0
        %339 = vmatpush1.msra.mxu0 0.0
        %340 = vmatprep.subr.mxu0 0.0
        %341 = vmatpush1.msra.mxu0 0.0
        %342 = vmatprep.subr.mxu0 0.0
        %343 = vmatpush1.msra.mxu0 0.0
        %344 = vmatprep.subr.mxu0 0.0
        %345 = vmatpush1.msra.mxu0 0.0
        %346 = vmatprep.subr.mxu0 0.0
        %347 = vmatpush1.msra.mxu0 0.0
        %348 = vmatprep.mubr.f32.mxu0 0.0
        %349 = vmatmul.mubr.f32.gmra.mrb[0].mxu0 %v279
        %v350 = vpop.f32.mrb[0].mxu0
        %v351 = vadd.f32 %v275, %v350
        %v352 = vpop.f32.mrb[0].mxu0
        %353 = vmatprep.mubr.f32.mxu0 0.0
        %354 = vmatmul.mubr.f32.gmra.mrb[0].mxu0 %v282
        %v355 = vpop.f32.mrb[0].mxu0
        %v356 = vadd.f32 %v275, %v355
        %v357 = vpop.f32.mrb[0].mxu0
        %358 = vdwg.mxu0
        %359 = vadd.xlane.f32.xlu0 %v351
        %v360 = vpop.xlane.xlu0 %359
        %361 = vadd.xlane.f32.xlu0 %v356
        %v362 = vpop.xlane.xlu0 %361
        %v363 = vmul.f32 %v360, 0.03125
        %v364 = vmul.f32 %v362, 0.03125
        %v365 = vsub.f32 %v351, %v363
        %v366 = vsub.f32 %v356, %v364
        %v367 = vmul.f32 %v365, %v365
        %v368 = vmul.f32 %v366, %v366
        %369 = vadd.xlane.f32.xlu0 %v367
        %v370 = vpop.xlane.xlu0 %369
        %371 = vadd.xlane.f32.xlu0 %v368
        %v372 = vpop.xlane.xlu0 %371
        %v373 = vmul.f32 %v363, 96.0
        %v374 = vmul.f32 %v364, 96.0
        %v375 = vmul.f32 %v373, %v363
        %v376 = vmul.f32 %v374, %v364
        %v377 = vsub.f32 %v370, %v375
        %v378 = vsub.f32 %v372, %v376
        %v379 = vmul.f32 %v377, 0.03125
        %v380 = vmul.f32 %v378, 0.03125
        %v381 = vmax.f32 %v379, 0.0
        %v382 = vmax.f32 %v380, 0.0
        %v383 = vadd.f32 %v381, 1e-05
        %v384 = vadd.f32 %v382, 1e-05
        %v385 = vrsqrt.pop %v383
        %v386 = vrsqrt.pop %v384
        %v387 = vmul.f32 %v365, %v385
        %v388 = vmul.f32 %v366, %v386
        %v389 = vld [vmem:[%s3] sm:$0x1]
        %v391 = vlaneseq
        %v392 = vshrl.u32 %v391, 7
        %v393 = vsub.s32 0, %v392
        %v394 = vrot.slane %v389, %v393
        %v396 = vmul.f32 %v387, %v394
        %v397 = vmul.f32 %v388, %v394
        %v398 = vld [vmem:[%s4] sm:$0x1]
        %v400 = vlaneseq
        %v401 = vshrl.u32 %v400, 7
        %v402 = vsub.s32 0, %v401
        %v403 = vrot.slane %v398, %v402
        %v405 = vadd.f32 %v396, %v403
        %v406 = vadd.f32 %v397, %v403
        %407 = vst [vmem:[%s257] sm:$0xff] %v405
        %408 = vst [vmem:[%s257 + $0x8] sm:$0xff] %v406
        %s409 = sand.u32 %s141, 1
        %s410 = scalar_lea.sflag [#allocation4], %s409
        %s411 = sand.u32 %s141, 1
        %s412 = smul.addr %s411, 16
        %s413 = scalar_lea.vmem [#allocation7], %s412
        // Predicated region
        $region49: #{tpu_custom_call.1} parent=39 // pred_check
          %p414 = pneg %p151
        $region50: #{tpu_custom_call.1} parent=39 // pred_check_branch
          %416 = sbr.rel (%p414) target = $region52
        $region51: #{tpu_custom_call.1} parent=39 // pred_region
          %s417 = smul.u32 2, %s23
          %s419 = ssub.s32 256, 256
          %420 = vsyncadd %s410, %s419
          %s421 = smul.addr %s417, 128
          %s422 = scalar_lea.hbm %s5, %s421
          %s423 = sshll.u32 %s413, 4
          %s424 = int_to_ptr.vmem [resolvable:$true] %s423
          %429 = dma.vmem_to_hbm [thread:$0]  %s424, 256, %s422, %s410, 128, 128, 8
        $region52: #{tpu_custom_call.1} parent=39 // pred_fallthru
          _
      $region40: #{tpu_custom_call.1} parent=5 // pred_fallthru
        _
      %p430 = scmp.le.s32.totalorder 2, %s18
      // Predicated region
      $region53: #{tpu_custom_call.1} parent=5 // pred_check
        %p431 = pneg %p430
      $region54: #{tpu_custom_call.1} parent=5 // pred_check_branch
        %433 = sbr.rel (%p431) target = $region56
      $region55: #{tpu_custom_call.1} parent=5 // pred_region
        %s434 = ssub.s32 %s18, 2
        // Predicated region
        $region57: #{tpu_custom_call.1} parent=55 // pred_check
          %p435 = pneg %p157
        $region58: #{tpu_custom_call.1} parent=55 // pred_check_branch
          %437 = sbr.rel (%p435) target = $region60
        $region59: #{tpu_custom_call.1} parent=55 // pred_region
          %s438 = sand.u32 %s142, 1
          %s439 = scalar_lea.sflag [#allocation4], %s438
          %s440 = sand.u32 %s142, 1
          %s441 = smul.addr %s440, 16
          %s442 = scalar_lea.vmem [#allocation7], %s441
          %443 = dma.done %s439, 256
        $region60: #{tpu_custom_call.1} parent=55 // pred_fallthru
          _
      $region56: #{tpu_custom_call.1} parent=5 // pred_fallthru
        _
    $region6: #{tpu_custom_call.1} parent=1 // loop_footer
      %s22 = sadd.s32 1, %s18
    $region7: #{tpu_custom_call.1} parent=1 // loop_footer_branch
      %17 = sbr.rel target = $region3
    $region8: #{tpu_custom_call.1} parent=1 // loop_exit
      _
    %444 = vsyncpa [#allocation3], 1
    %s445 = scalar_lea.sflag [#allocation3], 1
    %446 = vsyncpa %s445, 1
    %447 = vsyncpa [#allocation6], 1
    %448 = vsyncpa [#allocation4], 1
    %s449 = scalar_lea.sflag [#allocation4], 1
    %450 = vsyncpa %s449, 1

</llo_original>
